<compile_context>
chip_gen: v5e
topology: v5e:2x2
jax: 0.10.0
libtpu: 0.0.40
codegen_flags: <defaults>
</compile_context>

<pallas_src>
import functools

import numpy as np
import jax
import jax.numpy as jnp
from jax.experimental import pallas as pl
from jax.experimental.pallas import tpu as pltpu


def _round_up(x, m):
    return (x + m - 1) // m * m


def _input_block_kernel(lhs_ref, w_ref, bias_ref, o_ref,
                        *, NR, NC, PWA, TPH, PW, slope):
    """Fused conv(7x7,s2) + BN affine + leaky_relu + maxpool(3x3,s2) for one
    (batch, pooled-row-tile) grid step.

    lhs_ref  : (1, 1, NR*NC, K)      bf16 im2col patches (K = 147, unpadded in HBM)
    w_ref    : (K, Co_pad)           bf16 weight slab with BN scale folded in
    bias_ref : (1, Co_pad)           f32  beta - mean * scale
    o_ref    : (1, TPH, PW, Co_pad)  bf16 pooled output tile
    """
    # ---- convolution as ONE MXU matmul (bf16 operands, f32 accumulation) -------
    acc = jnp.dot(lhs_ref[0, 0], w_ref[...],
                  preferred_element_type=jnp.float32)            # (NR*NC, Co_pad)

    # ---- InPlaceABN: scale already folded into w; add bias + leaky_relu (f32) ---
    y = acc + bias_ref[...]
    y = jnp.where(y > 0.0, y, slope * y)
    C = y.shape[-1]
    y = y.reshape(NR, NC, C)                                     # NC multiple of 8

    # ---- MaxPool2d(kernel=3, stride=2, padding=1), vectorized ------------------
    # Column layout: [A: cols clip(2q-1), q=0..PW, padded to PWA (8-aligned)] ++
    #                [B: cols 2q, q<PW, padded]; pooled col q = max(A[q], B[q], A[q+1]).
    ca = y[:, 0:PWA, :]
    cb = y[:, PWA:PWA + PW, :]                                   # aligned sublane start
    cm = jnp.maximum(jnp.maximum(ca[:, :PW, :], cb), ca[:, 1:PW + 1, :])   # (NR, PW, C)
    # Row layout: [A: rows clip(2p-1), p=0..TPH] ++ [B: rows 2p, p<TPH].
    ra = cm[0:TPH + 1]
    rb = cm[TPH + 1:2 * TPH + 1]
    pooled = jnp.maximum(jnp.maximum(ra[:TPH], rb), ra[1:TPH + 1])         # (TPH, PW, C)

    o_ref[0] = pooled.astype(o_ref.dtype)                        # one lane-dense bf16 store


def input_block(x_nchw, w_hwio, gamma, beta, running_mean, running_var,
                eps=1e-3, slope=0.01, tile_ph=28):
    """InputBlock forward. x_nchw: (N, 3, H, W) f32. Returns (N, Co, PH, PW) f32."""
    N, Ci, H, W = x_nchw.shape
    KH, KW, _, Co = w_hwio.shape
    stride, pad = 2, 3

    OH = (H + 2 * pad - KH) // stride + 1
    OW = (W + 2 * pad - KW) // stride + 1
    PH = (OH + 2 - 3) // 2 + 1
    PW = (OW + 2 - 3) // 2 + 1

    K = KH * KW * Ci                       # 147, shipped unpadded (full-dim block)
    Co_pad = _round_up(Co, 128)            # lane-dense weights / activations / output

    PWA = _round_up(PW + 1, 8)             # col group A length (8-aligned => aligned B slice)
    PWB = _round_up(PW, 8)                 # col group B length (keeps NC a multiple of 8)
    NC = PWA + PWB

    # ---- pick pooled-row tile height against a VMEM budget (v7x has only 64 MiB) ----
    def _vmem_estimate(tph):
        nr = 2 * tph + 1
        m = nr * NC
        lhs_b = 2 * m * _round_up(K, 128) * 2          # double-buffered bf16 (lane-padded)
        w_b = 2 * _round_up(K, 16) * Co_pad * 2
        out_b = 2 * tph * _round_up(PW, 8) * Co_pad * 2
        interm = 3 * m * Co_pad * 4                    # f32 acc / activations / pool temps
        return lhs_b + w_b + out_b + interm + (2 << 20)

    TPH = max(1, min(tile_ph, PH))
    while TPH > 8 and _vmem_estimate(TPH) > 40 * 2**20:
        TPH = max(8, TPH // 2)
    vmem_limit = int(max(_vmem_estimate(TPH), 16 * 2**20))

    T = -(-PH // TPH)                      # ceil(PH / TPH)
    NR = 2 * TPH + 1                       # conv rows per tile (incl. +-1 pooling halo)

    # ---- im2col in the wrapper: 49 dense strided taps, ONE big materialization -------
    x = jnp.transpose(x_nchw, (0, 2, 3, 1)).astype(jnp.bfloat16)       # NHWC, bf16
    xpad = jnp.pad(x, ((0, 0), (pad, pad), (pad, pad), (0, 0)))
    taps = []
    for kh in range(KH):
        for kw in range(KW):
            taps.append(xpad[:, kh:kh + stride * (OH - 1) + 1:stride,
                             kw:kw + stride * (OW - 1) + 1:stride, :])
    patches = jnp.concatenate(taps, axis=-1)                            # (N, OH, OW, 147)

    # ---- pool-row halo + even/odd col grouping as one gather (replicate-clamp ==
    #      -inf-pad maxpool for this kernel/stride/padding) ----------------------------
    rows = np.concatenate([2 * np.arange(TPH + 1) - 1, 2 * np.arange(TPH)])      # (NR,)
    rows = np.clip(rows[None, :] + 2 * TPH * np.arange(T)[:, None], 0, OH - 1)   # (T, NR)
    cols_a = np.clip(2 * np.arange(PW + 1) - 1, 0, OW - 1)
    cols_a = np.concatenate([cols_a, np.full(PWA - cols_a.size, OW - 1)])
    cols_b = np.concatenate([2 * np.arange(PW), np.full(PWB - PW, OW - 1)])
    cols = np.concatenate([cols_a, cols_b]).astype(np.int32)                     # (NC,)

    lhs = patches[:, jnp.asarray(rows, jnp.int32)[:, :, None],
                  jnp.asarray(cols, jnp.int32)[None, None, :], :]        # (N, T, NR, NC, K)
    lhs = lhs.reshape(N, T, NR * NC, K)                                  # K=147, no HBM pad

    # ---- weight slab with BN scale folded in; bias stays f32 -------------------------
    scale = (gamma / jnp.sqrt(running_var + eps)).astype(jnp.float32)            # (Co,)
    bias = (beta - running_mean * scale).astype(jnp.float32)
    w2 = w_hwio.reshape(K, Co).astype(jnp.float32) * scale[None, :]
    w2 = jnp.pad(w2, ((0, 0), (0, Co_pad - Co))).astype(jnp.bfloat16)            # (K, Co_pad)
    bias = jnp.pad(bias, (0, Co_pad - Co)).reshape(1, Co_pad)

    kernel = functools.partial(_input_block_kernel,
                               NR=NR, NC=NC, PWA=PWA, TPH=TPH, PW=PW, slope=slope)

    out = pl.pallas_call(
        kernel,
        out_shape=jax.ShapeDtypeStruct((N, T * TPH, PW, Co_pad), jnp.bfloat16),
        grid_spec=pltpu.PrefetchScalarGridSpec(
            num_scalar_prefetch=0,
            grid=(N, T),
            in_specs=[
                pl.BlockSpec((1, 1, NR * NC, K), lambda n, t: (n, t, 0, 0)),
                pl.BlockSpec((K, Co_pad), lambda n, t: (0, 0)),
                pl.BlockSpec((1, Co_pad), lambda n, t: (0, 0)),
            ],
            out_specs=pl.BlockSpec((1, TPH, PW, Co_pad), lambda n, t: (n, t, 0, 0)),
        ),
        compiler_params=pltpu.CompilerParams(
            dimension_semantics=("parallel", "parallel"),
            vmem_limit_bytes=vmem_limit),
    )(lhs, w2, bias)

    # strip pooled-row / Co padding, back to PyTorch NCHW f32
    out = out[:, :PH, :, :Co].astype(jnp.float32)
    return jnp.transpose(out, (0, 3, 1, 2))


def _reference(x_nchw, w_hwio, gamma, beta, mean, var, eps=1e-3, slope=0.01):
    """Pure-JAX f32 reference for correctness check."""
    x = jnp.transpose(x_nchw, (0, 2, 3, 1))
    y = jax.lax.conv_general_dilated(
        x, w_hwio, window_strides=(2, 2), padding=((3, 3), (3, 3)),
        dimension_numbers=('NHWC', 'HWIO', 'NHWC'),
        precision=jax.lax.Precision.HIGHEST)
    scale = gamma / jnp.sqrt(var + eps)
    y = y * scale + (beta - mean * scale)
    y = jnp.where(y > 0, y, slope * y)
    y = jax.lax.reduce_window(
        y, -jnp.inf, jax.lax.max,
        window_dimensions=(1, 3, 3, 1), window_strides=(1, 2, 2, 1),
        padding=((0, 0), (1, 1), (1, 1), (0, 0)))
    return jnp.transpose(y, (0, 3, 1, 2))


if __name__ == "__main__":
    key = jax.random.PRNGKey(0)
    k1, k2, k3, k4, k5, k6 = jax.random.split(key, 6)

    N, Ci, H, W = 2, 3, 16, 16          # InputBlock conv takes 3 input channels
    num_init_features, KH, KW = 8, 7, 7

    x = jax.random.normal(k1, (N, Ci, H, W), jnp.float32)

    # Deterministic parameter init (torch Conv2d weight is OIHW; store as HWIO)
    w_oihw = jax.random.normal(k2, (num_init_features, Ci, KH, KW), jnp.float32) * 0.1
    w_hwio = jnp.transpose(w_oihw, (2, 3, 1, 0))
    gamma = 0.5 + jax.random.uniform(k3, (num_init_features,), jnp.float32)
    beta = jax.random.normal(k4, (num_init_features,), jnp.float32) * 0.1
    running_mean = jax.random.normal(k5, (num_init_features,), jnp.float32) * 0.1
    running_var = 0.5 + jax.random.uniform(k6, (num_init_features,), jnp.float32)

    out = input_block(x, w_hwio, gamma, beta, running_mean, running_var)
    out = jax.block_until_ready(out)

    ref = _reference(x, w_hwio, gamma, beta, running_mean, running_var)
    assert out.shape == (N, num_init_features, 4, 4), out.shape
    # bf16 inputs / scale-folded bf16 weights / bf16 output vs f32 reference -> ~1% delta
    if not bool(jnp.allclose(out, ref, atol=3e-2, rtol=3e-2)):
        raise AssertionError("Pallas kernel output does not match JAX reference")
    print("KERNEL_OK")
</pallas_src>

<mosaic_0001>
module attributes {stable_mosaic.version = 11 : i64} {
  func.func @_input_block_kernel(%arg0: i32, %arg1: i32, %arg2: memref<1x1x144x147xbf16, #tpu.memory_space<vmem>>, %arg3: memref<147x128xbf16, #tpu.memory_space<vmem>>, %arg4: memref<1x128xf32, #tpu.memory_space<vmem>>, %arg5: memref<1x4x4x128xbf16, #tpu.memory_space<vmem>>) attributes {dimension_semantics = [#tpu.dimension_semantics<parallel>, #tpu.dimension_semantics<parallel>], iteration_bounds = array<i64: 2, 1>, scalar_prefetch = 0 : i64, scratch_operands = 0 : i64, tpu.core_type = #tpu.core_type<tc>, window_params = [{transform_indices = @transform_0, window_bounds = array<i64: 1, 1, 144, 147>}, {pipeline_mode = #tpu.pipeline_mode<synchronous>, transform_indices = @transform_1, window_bounds = array<i64: 147, 128>}, {pipeline_mode = #tpu.pipeline_mode<synchronous>, transform_indices = @transform_2, window_bounds = array<i64: 1, 128>}, {transform_indices = @transform_3, window_bounds = array<i64: 1, 4, 4, 128>}]} {
    %c0 = arith.constant 0 : index
    %c0_0 = arith.constant 0 : index
    %c0_1 = arith.constant 0 : index
    %c0_2 = arith.constant 0 : index
    %0 = vector.load %arg2[%c0, %c0_0, %c0_1, %c0_2] : memref<1x1x144x147xbf16, #tpu.memory_space<vmem>>, vector<1x1x144x147xbf16>
    %1 = vector.shape_cast %0 : vector<1x1x144x147xbf16> to vector<144x147xbf16>
    %c0_3 = arith.constant 0 : index
    %c0_4 = arith.constant 0 : index
    %2 = vector.load %arg3[%c0_3, %c0_4] : memref<147x128xbf16, #tpu.memory_space<vmem>>, vector<147x128xbf16>
    %cst = arith.constant dense<0.000000e+00> : vector<144x128xf32>
    %3 = tpu.matmul %1, %2, %cst {dimension_numbers = #tpu.dot_dimension_numbers<[1], [0], [0], [1], [0, 0, 1, 1], [], []>} : vector<144x147xbf16>, vector<147x128xbf16>, vector<144x128xf32> -> vector<144x128xf32>
    %c0_5 = arith.constant 0 : index
    %c0_6 = arith.constant 0 : index
    %4 = vector.load %arg4[%c0_5, %c0_6] : memref<1x128xf32, #tpu.memory_space<vmem>>, vector<1x128xf32>
    %5 = vector.broadcast %4 : vector<1x128xf32> to vector<144x128xf32>
    %6 = arith.addf %3, %5 : vector<144x128xf32>
    %cst_7 = arith.constant 0.000000e+00 : f32
    %7 = vector.broadcast %cst_7 : f32 to vector<144x128xf32>
    %8 = arith.cmpf ogt, %6, %7 : vector<144x128xf32>
    %cst_8 = arith.constant 0.00999999977 : f32
    %9 = vector.broadcast %cst_8 : f32 to vector<144x128xf32>
    %10 = arith.mulf %9, %6 : vector<144x128xf32>
    %11 = arith.select %8, %6, %10 : vector<144x128xi1>, vector<144x128xf32>
    %12 = vector.shape_cast %11 : vector<144x128xf32> to vector<9x16x128xf32>
    %13 = vector.extract_strided_slice %12 {offsets = [0, 0, 0], sizes = [9, 8, 128], strides = [1, 1, 1]} : vector<9x16x128xf32> to vector<9x8x128xf32>
    %14 = vector.extract_strided_slice %12 {offsets = [0, 8, 0], sizes = [9, 4, 128], strides = [1, 1, 1]} : vector<9x16x128xf32> to vector<9x4x128xf32>
    %15 = vector.extract_strided_slice %13 {offsets = [0, 0, 0], sizes = [9, 4, 128], strides = [1, 1, 1]} : vector<9x8x128xf32> to vector<9x4x128xf32>
    %16 = arith.maximumf %15, %14 : vector<9x4x128xf32>
    %17 = vector.extract_strided_slice %13 {offsets = [0, 1, 0], sizes = [9, 4, 128], strides = [1, 1, 1]} : vector<9x8x128xf32> to vector<9x4x128xf32>
    %18 = arith.maximumf %16, %17 : vector<9x4x128xf32>
    %19 = vector.extract_strided_slice %18 {offsets = [0, 0, 0], sizes = [5, 4, 128], strides = [1, 1, 1]} : vector<9x4x128xf32> to vector<5x4x128xf32>
    %20 = vector.extract_strided_slice %18 {offsets = [5, 0, 0], sizes = [4, 4, 128], strides = [1, 1, 1]} : vector<9x4x128xf32> to vector<4x4x128xf32>
    %21 = vector.extract_strided_slice %19 {offsets = [0, 0, 0], sizes = [4, 4, 128], strides = [1, 1, 1]} : vector<5x4x128xf32> to vector<4x4x128xf32>
    %22 = arith.maximumf %21, %20 : vector<4x4x128xf32>
    %23 = vector.extract_strided_slice %19 {offsets = [1, 0, 0], sizes = [4, 4, 128], strides = [1, 1, 1]} : vector<5x4x128xf32> to vector<4x4x128xf32>
    %24 = arith.maximumf %22, %23 : vector<4x4x128xf32>
    %25 = arith.truncf %24 : vector<4x4x128xf32> to vector<4x4x128xbf16>
    %c0_9 = arith.constant 0 : index
    %c0_10 = arith.constant 0 : index
    %c0_11 = arith.constant 0 : index
    %c0_12 = arith.constant 0 : index
    %26 = vector.load %arg5[%c0_9, %c0_10, %c0_11, %c0_12] : memref<1x4x4x128xbf16, #tpu.memory_space<vmem>>, vector<1x4x4x128xbf16>
    %27 = vector.shape_cast %26 : vector<1x4x4x128xbf16> to vector<4x4x128xbf16>
    %28 = vector.shape_cast %25 : vector<4x4x128xbf16> to vector<1x4x4x128xbf16>
    tpu.vector_store %arg5[%c0_9, %c0_10, %c0_11, %c0_12], %28 {strides = array<i32>} : memref<1x4x4x128xbf16, #tpu.memory_space<vmem>>, vector<1x4x4x128xbf16>,
    return
  }
  func.func @transform_0(%arg0: i32, %arg1: i32) -> (i32, i32, i32, i32) {
    %c0_i32 = arith.constant 0 : i32
    %c0_i32_0 = arith.constant 0 : i32
    %c0_i32_1 = arith.constant 0 : i32
    return %arg0, %arg1, %c0_i32, %c0_i32_0 : i32, i32, i32, i32
  }
  func.func @transform_1(%arg0: i32, %arg1: i32) -> (i32, i32) {
    %c0_i32 = arith.constant 0 : i32
    %c0_i32_0 = arith.constant 0 : i32
    %c0_i32_1 = arith.constant 0 : i32
    return %c0_i32, %c0_i32_0 : i32, i32
  }
  func.func @transform_2(%arg0: i32, %arg1: i32) -> (i32, i32) {
    %c0_i32 = arith.constant 0 : i32
    %c0_i32_0 = arith.constant 0 : i32
    %c0_i32_1 = arith.constant 0 : i32
    return %c0_i32, %c0_i32_0 : i32, i32
  }
  func.func @transform_3(%arg0: i32, %arg1: i32) -> (i32, i32, i32, i32) {
    %c0_i32 = arith.constant 0 : i32
    %c0_i32_0 = arith.constant 0 : i32
    %c0_i32_1 = arith.constant 0 : i32
    return %arg0, %arg1, %c0_i32, %c0_i32_0 : i32, i32, i32, i32
  }
}

</mosaic_0001>

<llo_original>
// kernel: tpu_custom_call.1
$region0: #{tpu_custom_call.1}
  #allocation0 [shape = 'u32[]', space=smem, size = 0x4, offset = 0x4, fixed_abs, tag = 'smem constant byte address 0x4 - core index']
  #allocation1 [shape = 'u32[72,128]{1,0:T(1,128)}', space=vmem, size = 0x9000, scoped, tag = 'internal scratch']
  %s0 = inlined_call_operand.hbm [shape: bf16[2,1,144,147], index: 0, kind: input, shape index: {}]
  %s1 = inlined_call_operand.hbm [shape: bf16[147,128], index: 1, kind: input, shape index: {}]
  %s2 = inlined_call_operand.vmem [shape: f32[1,128], index: 2, kind: input, shape index: {}]
  %s3 = inlined_call_operand.hbm [shape: bf16[2,4,4,128], index: 3, kind: output, shape index: {}]
  %s4 = sld [smem:[#allocation0]]
  $region53: #{tpu_custom_call.1} parent=0
    _
  %s6 = ssub.s32 1, %s4
  %s7 = scalar_select 0, %s6, %s4
  $region1: #{tpu_custom_call.1} parent=0
    #allocation2 [shape = 'u8[147456]{0}', space=vmem, size = 0x24000, scoped, tag = 'input window, operand 0']
    #allocation3 [shape = 's32[2]{0}', space=sflag, size = 0x8, scoped, tag = 'scoped memory for tpu_custom_call.1']
    #allocation4 [shape = 's32[2]{0}', space=sflag, size = 0x8, scoped, tag = 'scoped memory for tpu_custom_call.1']
    #allocation5 [shape = 'u8[38912]{0}', space=vmem, size = 0x9800, scoped, tag = 'input window, operand 1, single buffered']
    #allocation6 [shape = 's32[1]{0}', space=sflag, size = 0x4, scoped, tag = 'scoped memory for tpu_custom_call.1']
    #allocation7 [shape = 'u8[8192]{0}', space=vmem, size = 0x2000, scoped, tag = 'output window, operand 0']
    %8 = vsyncpa [#allocation3], 0
    %s9 = scalar_lea.sflag [#allocation3], 1
    %10 = vsyncpa %s9, 0
    %11 = vsyncpa [#allocation6], 0
    %12 = vsyncpa [#allocation4], 0
    %s13 = scalar_lea.sflag [#allocation4], 1
    %14 = vsyncpa %s13, 0
    loop: start=0, step=1, limit=4
    $region2: #{tpu_custom_call.1} parent=1 // loop_pre_header
      _
    $region3: #{tpu_custom_call.1} parent=1 // loop_header
      %s16 = sphi 0, %s20
      %p17 = scmp.ge.s32.totalorder %s16, 4
      %s23 = sphi 0, %s35
      %s24 = sphi 0, %s31
      %s25 = sphi 0, %s23
      %s26 = sphi 0, %s24
      %s27 = sphi 0, %s25
      %s28 = sphi 0, %s26
      %s40 = sphi 0, %s42
      %s43 = sphi 0, %s40
      %s44 = sphi 0, %s43
      %s60 = sphi 0, %s44
      %s64 = sphi 0, %s64
      %s66 = sphi 0, %s64
      %s67 = sphi 0, %s66
      %s81 = sphi 0, %s67
      %s85 = sphi 0, %s85
      %s87 = sphi 0, %s85
      %s88 = sphi 0, %s87
      %s102 = sphi 0, %s88
      %s110 = sphi 0, %s112
      %s113 = sphi 0, %s110
      %s114 = sphi 0, %s113
      %s130 = sphi 0, %s114
    $region4: #{tpu_custom_call.1} parent=1 // loop_header_branch
      %19 = sbr.rel (%p17) target = $region8
    $region5: #{tpu_custom_call.1} parent=1 // loop_body
      %s21 = ssub.s32 %s16, 1
      %s22 = ssub.s32 %s16, 2
      %s29 = sadd.s32 1, %s24
      %p30 = scmp.ge.s32.totalorder %s29, 1
      %s31 = scalar_select %p30, 0, %s29
      %s32 = sadd.s32 1, %s23
      %s33 = scalar_select %p30, %s32, %s23
      %p34 = scmp.ge.s32.totalorder %s33, 2
      %s35 = scalar_select %p34, 0, %s33
      %s36 = ssub.s32 %s23, %s35
      %s37 = ssub.s32 %s24, %s31
      %s38 = sor.u32 %s36, %s37
      %p39 = scmp.eq.s32.totalorder %s38, 0
      %s41 = sadd.s32 %s40, 1
      %s42 = scalar_select %p39, %s40, %s41
      %p45 = pneg %p39
      %p46 = scmp.eq.s32.totalorder %s16, 1
      %p47 = por %p45, %p46
      %p48 = scmp.ne.s32.totalorder %s40, %s43
      %p49 = scmp.eq.s32.totalorder %s16, 0
      %p50 = por %p48, %p49
      %p51 = scmp.ne.s32.totalorder %s40, %s43
      %p52 = scmp.eq.s32.totalorder %s21, 1
      %p53 = por %p51, %p52
      %p54 = scmp.ne.s32.totalorder %s43, %s44
      %p55 = scmp.eq.s32.totalorder %s21, 0
      %p56 = por %p54, %p55
      %p57 = scmp.ne.s32.totalorder %s43, %s44
      %p58 = scmp.eq.s32.totalorder %s22, 1
      %p59 = por %p57, %p58
      %p61 = scmp.ne.s32.totalorder %s44, %s60
      %p62 = scmp.eq.s32.totalorder %s22, 0
      %p63 = por %p61, %p62
      %s65 = sadd.s32 %s64, 1
      %p68 = scmp.eq.s32.totalorder %s16, 1
      %p69 = scmp.ne.s32.totalorder %s64, %s66
      %p70 = scmp.eq.s32.totalorder %s16, 0
      %p71 = por %p69, %p70
      %p72 = scmp.ne.s32.totalorder %s64, %s66
      %p73 = scmp.eq.s32.totalorder %s21, 1
      %p74 = por %p72, %p73
      %p75 = scmp.ne.s32.totalorder %s66, %s67
      %p76 = scmp.eq.s32.totalorder %s21, 0
      %p77 = por %p75, %p76
      %p78 = scmp.ne.s32.totalorder %s66, %s67
      %p79 = scmp.eq.s32.totalorder %s22, 1
      %p80 = por %p78, %p79
      %p82 = scmp.ne.s32.totalorder %s67, %s81
      %p83 = scmp.eq.s32.totalorder %s22, 0
      %p84 = por %p82, %p83
      %s86 = sadd.s32 %s85, 1
      %p89 = scmp.eq.s32.totalorder %s16, 1
      %p90 = scmp.ne.s32.totalorder %s85, %s87
      %p91 = scmp.eq.s32.totalorder %s16, 0
      %p92 = por %p90, %p91
      %p93 = scmp.ne.s32.totalorder %s85, %s87
      %p94 = scmp.eq.s32.totalorder %s21, 1
      %p95 = por %p93, %p94
      %p96 = scmp.ne.s32.totalorder %s87, %s88
      %p97 = scmp.eq.s32.totalorder %s21, 0
      %p98 = por %p96, %p97
      %p99 = scmp.ne.s32.totalorder %s87, %s88
      %p100 = scmp.eq.s32.totalorder %s22, 1
      %p101 = por %p99, %p100
      %p103 = scmp.ne.s32.totalorder %s88, %s102
      %p104 = scmp.eq.s32.totalorder %s22, 0
      %p105 = por %p103, %p104
      %s106 = ssub.s32 %s23, %s35
      %s107 = ssub.s32 %s24, %s31
      %s108 = sor.u32 %s106, %s107
      %p109 = scmp.eq.s32.totalorder %s108, 0
      %s111 = sadd.s32 %s110, 1
      %s112 = scalar_select %p109, %s110, %s111
      %p115 = pneg %p109
      %p116 = scmp.eq.s32.totalorder %s16, 1
      %p117 = por %p115, %p116
      %p118 = scmp.ne.s32.totalorder %s110, %s113
      %p119 = scmp.eq.s32.totalorder %s16, 0
      %p120 = por %p118, %p119
      %p121 = scmp.ne.s32.totalorder %s110, %s113
      %p122 = scmp.eq.s32.totalorder %s21, 1
      %p123 = por %p121, %p122
      %p124 = scmp.ne.s32.totalorder %s113, %s114
      %p125 = scmp.eq.s32.totalorder %s21, 0
      %p126 = por %p124, %p125
      %p127 = scmp.ne.s32.totalorder %s113, %s114
      %p128 = scmp.eq.s32.totalorder %s22, 1
      %p129 = por %p127, %p128
      %p131 = scmp.ne.s32.totalorder %s114, %s130
      %p132 = scmp.eq.s32.totalorder %s22, 0
      %p133 = por %p131, %p132
      %p134 = scmp.le.s32.totalorder 1, %s16
      %p135 = scmp.lt.s32.totalorder %s16, 3
      %p136 = pnand %p134, %p135
      %p137 = pneg %p136
      // Predicated region
      $region9: #{tpu_custom_call.1} parent=5 // pred_check
        _
      $region10: #{tpu_custom_call.1} parent=5 // pred_check_branch
        %139 = sbr.rel (%p136) target = $region12
      $region11: #{tpu_custom_call.1} parent=5 // pred_region
        %s140 = ssub.s32 %s16, 1
        // Predicated region
        $region13: #{tpu_custom_call.1} parent=11 // pred_check
          %p141 = pneg %p77
        $region14: #{tpu_custom_call.1} parent=11 // pred_check_branch
          %143 = sbr.rel (%p141) target = $region16
        $region15: #{tpu_custom_call.1} parent=11 // pred_region
          %145 = vsyncadd [#allocation6], 0
          %s146 = sshll.u32 %s1, 4
          %s147 = int_to_ptr.hbm [resolvable:$true] %s146
          %s148 = sshll.u32 [#allocation5], 4
          %s149 = int_to_ptr.vmem [resolvable:$true] %s148
          %154 = dma.hbm_to_vmem [thread:$0]  %s147, 1216, %s149, [#allocation6], 64, 64, 4
        $region16: #{tpu_custom_call.1} parent=11 // pred_fallthru
          _
        // Predicated region
        $region17: #{tpu_custom_call.1} parent=11 // pred_check
          %p155 = pneg %p98
        $region18: #{tpu_custom_call.1} parent=11 // pred_check_branch
          %157 = sbr.rel (%p155) target = $region20
        $region19: #{tpu_custom_call.1} parent=11 // pred_region
          _
        $region20: #{tpu_custom_call.1} parent=11 // pred_fallthru
          _
      $region12: #{tpu_custom_call.1} parent=5 // pred_fallthru
        _
      %p158 = scmp.lt.s32.totalorder %s16, 2
      // Predicated region
      $region21: #{tpu_custom_call.1} parent=5 // pred_check
        %p159 = pneg %p158
      $region22: #{tpu_custom_call.1} parent=5 // pred_check_branch
        %161 = sbr.rel (%p159) target = $region24
      $region23: #{tpu_custom_call.1} parent=5 // pred_region
        // Predicated region
        $region25: #{tpu_custom_call.1} parent=23 // pred_check
          %p162 = pneg %p50
        $region26: #{tpu_custom_call.1} parent=23 // pred_check_branch
          %164 = sbr.rel (%p162) target = $region28
        $region27: #{tpu_custom_call.1} parent=23 // pred_region
          %s165 = sand.u32 %s40, 1
          %s166 = scalar_lea.sflag [#allocation3], %s165
          %s167 = sand.u32 %s40, 1
          %s168 = smul.addr %s167, 144
          %s169 = scalar_lea.vmem [#allocation2], %s168
          %171 = vsyncadd %s166, 0
          %s172 = smul.addr %s24, 36
          %s173 = smul.addr %s23, 36
          %s174 = sadd.s32 %s172, %s173
          %s175 = smul.addr %s174, 4
          %s176 = scalar_lea.hbm %s0, %s175
          %s177 = sshll.u32 %s176, 4
          %s178 = int_to_ptr.hbm [resolvable:$true] %s177
          %s179 = sshll.u32 %s169, 4
          %s180 = int_to_ptr.vmem [resolvable:$true] %s179
          %185 = dma.hbm_to_vmem [thread:$0]  %s178, 2304, %s180, %s166, 128, 128, 8
        $region28: #{tpu_custom_call.1} parent=23 // pred_fallthru
          _
      $region24: #{tpu_custom_call.1} parent=5 // pred_fallthru
        _
      %p186 = scmp.le.s32.totalorder 1, %s16
      %p187 = scmp.lt.s32.totalorder %s16, 3
      %p188 = pnand %p186, %p187
      %p189 = pneg %p188
      // Predicated region
      $region29: #{tpu_custom_call.1} parent=5 // pred_check
        _
      $region30: #{tpu_custom_call.1} parent=5 // pred_check_branch
        %191 = sbr.rel (%p188) target = $region32
      $region31: #{tpu_custom_call.1} parent=5 // pred_region
        %s192 = ssub.s32 %s16, 1
        %s193 = sand.u32 %s43, 1
        %s194 = scalar_lea.sflag [#allocation3], %s193
        %s195 = sand.u32 %s43, 1
        %s196 = smul.addr %s195, 144
        %s197 = scalar_lea.vmem [#allocation2], %s196
        // Predicated region
        $region33: #{tpu_custom_call.1} parent=31 // pred_check
          %p198 = pneg %p56
        $region34: #{tpu_custom_call.1} parent=31 // pred_check_branch
          %200 = sbr.rel (%p198) target = $region36
        $region35: #{tpu_custom_call.1} parent=31 // pred_region
          %202 = dma.done %s194, 2304
        $region36: #{tpu_custom_call.1} parent=31 // pred_fallthru
          _
        // Predicated region
        $region37: #{tpu_custom_call.1} parent=31 // pred_check
          %p203 = pneg %p77
        $region38: #{tpu_custom_call.1} parent=31 // pred_check_branch
          %205 = sbr.rel (%p203) target = $region40
        $region39: #{tpu_custom_call.1} parent=31 // pred_region
          %207 = dma.done [#allocation6], 1216
        $region40: #{tpu_custom_call.1} parent=31 // pred_fallthru
          _
        %s208 = sand.u32 %s43, 1
        %s209 = scalar_lea.sflag [#allocation3], %s208
        %s210 = sand.u32 %s43, 1
        %s211 = smul.addr %s210, 144
        %s212 = scalar_lea.vmem [#allocation2], %s211
        %p213 = pneg %p56
        %p214 = pneg %p53
        %p215 = pneg %p77
        %p216 = pneg %p74
        %p217 = pneg %p98
        %p218 = pneg %p95
        %p219 = pneg %p126
        %p220 = pneg %p123
        %s221 = sand.u32 %s113, 1
        %s222 = scalar_lea.sflag [#allocation4], %s221
        %s223 = sand.u32 %s113, 1
        %s224 = smul.addr %s223, 8
        %s225 = scalar_lea.vmem [#allocation7], %s224
        %s226 = smul.u32 4, %s26
        %v228 = vld [vmem:[%s197] sm:$0xff]
        %v229 = vld [vmem:[%s197 + $0x8] sm:$0xff]
        %v230 = vld [vmem:[%s197 + $0x10] sm:$0xff]
        %v231 = vld [vmem:[%s197 + $0x18] sm:$0xff]
        %v232 = vld [vmem:[%s197 + $0x20] sm:$0xff]
        %v233 = vld [vmem:[%s197 + $0x28] sm:$0xff]
        %v234 = vld [vmem:[%s197 + $0x30] sm:$0xff]
        %v235 = vld [vmem:[%s197 + $0x38] sm:$0xff]
        %v236 = vld [vmem:[%s197 + $0x40] sm:$0xff]
        %v237 = vld [vmem:[%s197 + $0x48] sm:$0xff]
        %v238 = vld [vmem:[%s197 + $0x50] sm:$0xff]
        %v239 = vld [vmem:[%s197 + $0x58] sm:$0xff]
        %v240 = vld [vmem:[%s197 + $0x60] sm:$0xff]
        %v241 = vld [vmem:[%s197 + $0x68] sm:$0xff]
        %v242 = vld [vmem:[%s197 + $0x70] sm:$0xff]
        %v243 = vld [vmem:[%s197 + $0x78] sm:$0xff]
        %v244 = vld [vmem:[%s197 + $0x80] sm:$0xff]
        %v245 = vld [vmem:[%s197 + $0x88] sm:$0xff]
        %v246 = vld [vmem:[#allocation5] sm:$0xf]
        %v247 = vld [vmem:[#allocation5 + $0x4] sm:$0xf]
        %v248 = vld [vmem:[#allocation5 + $0x8] sm:$0xf]
        %v249 = vld [vmem:[#allocation5 + $0xc] sm:$0xf]
        %v250 = vld [vmem:[#allocation5 + $0x10] sm:$0xf]
        %v251 = vld [vmem:[#allocation5 + $0x14] sm:$0xf]
        %v252 = vld [vmem:[#allocation5 + $0x18] sm:$0xf]
        %v253 = vld [vmem:[#allocation5 + $0x1c] sm:$0xf]
        %v254 = vld [vmem:[#allocation5 + $0x20] sm:$0xf]
        %v255 = vld [vmem:[#allocation5 + $0x24] sm:$0xf]
        %v256 = vld [vmem:[#allocation5 + $0x28] sm:$0xf]
        %v257 = vld [vmem:[#allocation5 + $0x2c] sm:$0xf]
        %v258 = vld [vmem:[#allocation5 + $0x30] sm:$0xf]
        %v259 = vld [vmem:[#allocation5 + $0x34] sm:$0xf]
        %v260 = vld [vmem:[#allocation5 + $0x38] sm:$0xf]
        %v261 = vld [vmem:[#allocation5 + $0x3c] sm:$0xf]
        %v262 = vld [vmem:[#allocation5 + $0x40] sm:$0xf]
        %v263 = vld [vmem:[#allocation5 + $0x44] sm:$0xf]
        %v264 = vld [vmem:[#allocation5 + $0x48] sm:$0x3]
        %v265 = vld [vmem:[%s2] sm:$0x1]
        %v267 = vperm.slane %v265, 0
        %v287 = vunpack.c.l.b16 %v228
        %v288 = vunpack.c.h.b16 %v228
        %v289 = vunpack.c.l.b16 %v229
        %v290 = vunpack.c.h.b16 %v229
        %v291 = vunpack.c.l.b16 %v230
        %v292 = vunpack.c.h.b16 %v230
        %v293 = vunpack.c.l.b16 %v231
        %v294 = vunpack.c.h.b16 %v231
        %v295 = vunpack.c.l.b16 %v232
        %v296 = vunpack.c.h.b16 %v232
        %v297 = vunpack.c.l.b16 %v233
        %v298 = vunpack.c.h.b16 %v233
        %v299 = vunpack.c.l.b16 %v234
        %v300 = vunpack.c.h.b16 %v234
        %v301 = vunpack.c.l.b16 %v235
        %v302 = vunpack.c.h.b16 %v235
        %v303 = vunpack.c.l.b16 %v236
        %v304 = vunpack.c.h.b16 %v236
        %v305 = vunpack.c.l.b16 %v237
        %v306 = vunpack.c.h.b16 %v237
        %v307 = vunpack.c.l.b16 %v238
        %v308 = vunpack.c.h.b16 %v238
        %v309 = vunpack.c.l.b16 %v239
        %v310 = vunpack.c.h.b16 %v239
        %v311 = vunpack.c.l.b16 %v240
        %v312 = vunpack.c.h.b16 %v240
        %v313 = vunpack.c.l.b16 %v241
        %v314 = vunpack.c.h.b16 %v241
        %v315 = vunpack.c.l.b16 %v242
        %v316 = vunpack.c.h.b16 %v242
        %v317 = vunpack.c.l.b16 %v243
        %v318 = vunpack.c.h.b16 %v243
        %v319 = vunpack.c.l.b16 %v244
        %v320 = vunpack.c.h.b16 %v244
        %v321 = vunpack.c.l.b16 %v245
        %v322 = vunpack.c.h.b16 %v245
        %v323 = vpack.c.b16 %v289, %v287
        %v324 = vpack.c.b16 %v290, %v288
        %v325 = vpack.c.b16 %v293, %v291
        %v326 = vpack.c.b16 %v294, %v292
        %v327 = vpack.c.b16 %v297, %v295
        %v328 = vpack.c.b16 %v298, %v296
        %v329 = vpack.c.b16 %v301, %v299
        %v330 = vpack.c.b16 %v302, %v300
        %v331 = vpack.c.b16 %v305, %v303
        %v332 = vpack.c.b16 %v306, %v304
        %v333 = vpack.c.b16 %v309, %v307
        %v334 = vpack.c.b16 %v310, %v308
        %v335 = vpack.c.b16 %v313, %v311
        %v336 = vpack.c.b16 %v314, %v312
        %v337 = vpack.c.b16 %v317, %v315
        %v338 = vpack.c.b16 %v318, %v316
        %v339 = vpack.c.b16 %v321, %v319
        %v340 = vpack.c.b16 %v322, %v320
        %v369 = vunpack.c.l.b16 %v246
        %v370 = vunpack.c.l.b16 %v247
        %v371 = vunpack.c.l.b16 %v248
        %v372 = vunpack.c.l.b16 %v249
        %v373 = vunpack.c.l.b16 %v250
        %v374 = vunpack.c.l.b16 %v251
        %v375 = vunpack.c.l.b16 %v252
        %v376 = vunpack.c.l.b16 %v253
        %v377 = vunpack.c.l.b16 %v254
        %v378 = vunpack.c.l.b16 %v255
        %v379 = vunpack.c.l.b16 %v256
        %v380 = vunpack.c.l.b16 %v257
        %v381 = vunpack.c.l.b16 %v258
        %v382 = vunpack.c.l.b16 %v259
        %v383 = vunpack.c.l.b16 %v260
        %v384 = vunpack.c.l.b16 %v261
        %v385 = vunpack.c.l.b16 %v262
        %v386 = vunpack.c.l.b16 %v263
        %v387 = vunpack.c.l.b16 %v264
        %v388 = vpack.c.b16 %v370, %v369
        %v389 = vpack.c.b16 %v372, %v371
        %v390 = vpack.c.b16 %v374, %v373
        %v391 = vpack.c.b16 %v376, %v375
        %v392 = vpack.c.b16 %v378, %v377
        %v393 = vpack.c.b16 %v380, %v379
        %v394 = vpack.c.b16 %v382, %v381
        %v395 = vpack.c.b16 %v384, %v383
        %v396 = vpack.c.b16 %v386, %v385
        %v397 = vpack.c.b16 %v387, %v387
        %vm407 = vcmask 154624
        %v409 = vsel %vm407, %v324, 0
        %v412 = vsel %vm407, %v326, 0
        %v415 = vsel %vm407, %v328, 0
        %v418 = vsel %vm407, %v330, 0
        %v421 = vsel %vm407, %v332, 0
        %v424 = vsel %vm407, %v334, 0
        %v427 = vsel %vm407, %v336, 0
        %v430 = vsel %vm407, %v338, 0
        %v433 = vsel %vm407, %v340, 0
        %vm435 = vcmask 1040384
        %vm436 = vcmask 1041408
        %v437 = vsel %vm435, 4294967295, 65535
        %v438 = vsel %vm436, %v437, 0
        %v440 = vand.u32 %v397, %v438
        %442 = vmatpush.bf16.msra.mxu0 %v395
        %443 = vmatpush.bf16.msra.mxu0 %v394
        %444 = vmatpush.bf16.msra.mxu0 %v393
        %445 = vmatpush.bf16.msra.mxu0 %v392
        %446 = vmatpush.bf16.msra.mxu0 %v391
        %447 = vmatpush.bf16.msra.mxu0 %v390
        %448 = vmatpush.bf16.msra.mxu0 %v389
        %449 = vmatpush.bf16.msra.mxu0 %v388
        %450 = vmatmul.bf16.gmra.mxu0 %v323
        %v451 = vpop.f32.mrf.mxu0
        %v452 = vadd.f32 %v267, %v451
        %v453 = vpop.f32.mrf.mxu0
        %v454 = vadd.f32 %v267, %v453
        %455 = vmatmul.bf16.gmra.mxu0 %v325
        %v456 = vpop.f32.mrf.mxu0
        %v457 = vadd.f32 %v267, %v456
        %v458 = vpop.f32.mrf.mxu0
        %v459 = vadd.f32 %v267, %v458
        %460 = vmatmul.bf16.gmra.mxu0 %v327
        %v461 = vpop.f32.mrf.mxu0
        %v462 = vadd.f32 %v267, %v461
        %v463 = vpop.f32.mrf.mxu0
        %v464 = vadd.f32 %v267, %v463
        %465 = vmatmul.bf16.gmra.mxu0 %v329
        %v466 = vpop.f32.mrf.mxu0
        %v467 = vadd.f32 %v267, %v466
        %v468 = vpop.f32.mrf.mxu0
        %v469 = vadd.f32 %v267, %v468
        %470 = vmatmul.bf16.gmra.mxu0 %v331
        %v471 = vpop.f32.mrf.mxu0
        %v472 = vadd.f32 %v267, %v471
        %v473 = vpop.f32.mrf.mxu0
        %v474 = vadd.f32 %v267, %v473
        %475 = vmatmul.bf16.gmra.mxu0 %v333
        %v476 = vpop.f32.mrf.mxu0
        %v477 = vadd.f32 %v267, %v476
        %v478 = vpop.f32.mrf.mxu0
        %v479 = vadd.f32 %v267, %v478
        %480 = vmatmul.bf16.gmra.mxu0 %v335
        %v481 = vpop.f32.mrf.mxu0
        %v482 = vadd.f32 %v267, %v481
        %v483 = vpop.f32.mrf.mxu0
        %v484 = vadd.f32 %v267, %v483
        %485 = vmatmul.bf16.gmra.mxu0 %v337
        %v486 = vpop.f32.mrf.mxu0
        %v487 = vadd.f32 %v267, %v486
        %v488 = vpop.f32.mrf.mxu0
        %v489 = vadd.f32 %v267, %v488
        %490 = vmatmul.bf16.gmra.mxu0 %v339
        %v491 = vpop.f32.mrf.mxu0
        %v492 = vadd.f32 %v267, %v491
        %v493 = vpop.f32.mrf.mxu0
        %v494 = vadd.f32 %v267, %v493
        %495 = vdwg.mxu0
        %496 = vmatpush.bf16.msra.mxu0 0
        %497 = vmatpush.bf16.msra.mxu0 0
        %498 = vmatpush.bf16.msra.mxu0 0
        %499 = vmatpush.bf16.msra.mxu0 0
        %500 = vmatpush.bf16.msra.mxu0 0
        %501 = vmatpush.bf16.msra.mxu0 0
        %502 = vmatpush.bf16.msra.mxu0 %v440
        %503 = vmatpush.bf16.msra.mxu0 %v396
        %504 = vmatmul.bf16.gmra.mxu0 %v409
        %v505 = vpop.f32.mrf.mxu0
        %v506 = vadd.f32 %v452, %v505
        %v507 = vpop.f32.mrf.mxu0
        %v508 = vadd.f32 %v454, %v507
        %509 = vmatmul.bf16.gmra.mxu0 %v412
        %v510 = vpop.f32.mrf.mxu0
        %v511 = vadd.f32 %v457, %v510
        %v512 = vpop.f32.mrf.mxu0
        %v513 = vadd.f32 %v459, %v512
        %514 = vmatmul.bf16.gmra.mxu0 %v415
        %v515 = vpop.f32.mrf.mxu0
        %v516 = vadd.f32 %v462, %v515
        %v517 = vpop.f32.mrf.mxu0
        %v518 = vadd.f32 %v464, %v517
        %519 = vmatmul.bf16.gmra.mxu0 %v418
        %v520 = vpop.f32.mrf.mxu0
        %v521 = vadd.f32 %v467, %v520
        %v522 = vpop.f32.mrf.mxu0
        %v523 = vadd.f32 %v469, %v522
        %524 = vmatmul.bf16.gmra.mxu0 %v421
        %v525 = vpop.f32.mrf.mxu0
        %v526 = vadd.f32 %v472, %v525
        %v527 = vpop.f32.mrf.mxu0
        %v528 = vadd.f32 %v474, %v527
        %529 = vmatmul.bf16.gmra.mxu0 %v424
        %v530 = vpop.f32.mrf.mxu0
        %v531 = vadd.f32 %v477, %v530
        %v532 = vpop.f32.mrf.mxu0
        %v533 = vadd.f32 %v479, %v532
        %534 = vmatmul.bf16.gmra.mxu0 %v427
        %v535 = vpop.f32.mrf.mxu0
        %v536 = vadd.f32 %v482, %v535
        %v537 = vpop.f32.mrf.mxu0
        %v538 = vadd.f32 %v484, %v537
        %539 = vmatmul.bf16.gmra.mxu0 %v430
        %v540 = vpop.f32.mrf.mxu0
        %v541 = vadd.f32 %v487, %v540
        %v542 = vpop.f32.mrf.mxu0
        %v543 = vadd.f32 %v489, %v542
        %544 = vmatmul.bf16.gmra.mxu0 %v433
        %v545 = vpop.f32.mrf.mxu0
        %v546 = vadd.f32 %v492, %v545
        %v547 = vpop.f32.mrf.mxu0
        %v548 = vadd.f32 %v494, %v547
        %549 = vdwg.mxu0
        %vm550 = vcmp.gt.f32.partialorder %v506, 0.0
        %vm551 = vcmp.gt.f32.partialorder %v508, 0.0
        %vm552 = vcmp.gt.f32.partialorder %v511, 0.0
        %vm553 = vcmp.gt.f32.partialorder %v513, 0.0
        %vm554 = vcmp.gt.f32.partialorder %v516, 0.0
        %vm555 = vcmp.gt.f32.partialorder %v518, 0.0
        %vm556 = vcmp.gt.f32.partialorder %v521, 0.0
        %vm557 = vcmp.gt.f32.partialorder %v523, 0.0
        %vm558 = vcmp.gt.f32.partialorder %v526, 0.0
        %vm559 = vcmp.gt.f32.partialorder %v528, 0.0
        %vm560 = vcmp.gt.f32.partialorder %v531, 0.0
        %vm561 = vcmp.gt.f32.partialorder %v533, 0.0
        %vm562 = vcmp.gt.f32.partialorder %v536, 0.0
        %vm563 = vcmp.gt.f32.partialorder %v538, 0.0
        %vm564 = vcmp.gt.f32.partialorder %v541, 0.0
        %vm565 = vcmp.gt.f32.partialorder %v543, 0.0
        %vm566 = vcmp.gt.f32.partialorder %v546, 0.0
        %vm567 = vcmp.gt.f32.partialorder %v548, 0.0
        %v568 = vmul.f32 %v506, 0.01
        %v569 = vmul.f32 %v508, 0.01
        %v570 = vmul.f32 %v511, 0.01
        %v571 = vmul.f32 %v513, 0.01
        %v572 = vmul.f32 %v516, 0.01
        %v573 = vmul.f32 %v518, 0.01
        %v574 = vmul.f32 %v521, 0.01
        %v575 = vmul.f32 %v523, 0.01
        %v576 = vmul.f32 %v526, 0.01
        %v577 = vmul.f32 %v528, 0.01
        %v578 = vmul.f32 %v531, 0.01
        %v579 = vmul.f32 %v533, 0.01
        %v580 = vmul.f32 %v536, 0.01
        %v581 = vmul.f32 %v538, 0.01
        %v582 = vmul.f32 %v541, 0.01
        %v583 = vmul.f32 %v543, 0.01
        %v584 = vmul.f32 %v546, 0.01
        %v585 = vmul.f32 %v548, 0.01
        %v586 = vsel %vm550, %v506, %v568
        %v587 = vsel %vm551, %v508, %v569
        %v588 = vsel %vm552, %v511, %v570
        %v589 = vsel %vm553, %v513, %v571
        %v590 = vsel %vm554, %v516, %v572
        %v591 = vsel %vm555, %v518, %v573
        %v592 = vsel %vm556, %v521, %v574
        %v593 = vsel %vm557, %v523, %v575
        %v594 = vsel %vm558, %v526, %v576
        %v595 = vsel %vm559, %v528, %v577
        %v596 = vsel %vm560, %v531, %v578
        %v597 = vsel %vm561, %v533, %v579
        %v598 = vsel %vm562, %v536, %v580
        %v599 = vsel %vm563, %v538, %v581
        %v600 = vsel %vm564, %v541, %v582
        %v601 = vsel %vm565, %v543, %v583
        %v602 = vsel %vm566, %v546, %v584
        %v603 = vsel %vm567, %v548, %v585
        %v604 = vmax.f32 %v586, %v587
        %v605 = vmax.f32 %v588, %v589
        %v606 = vmax.f32 %v590, %v591
        %v607 = vmax.f32 %v592, %v593
        %v608 = vmax.f32 %v594, %v595
        %v609 = vmax.f32 %v596, %v597
        %v610 = vmax.f32 %v598, %v599
        %v611 = vmax.f32 %v600, %v601
        %v612 = vmax.f32 %v602, %v603
        %v622 = vrot.slane %v586, 1
        %v623 = vrot.slane %v588, 1
        %v624 = vrot.slane %v590, 1
        %v625 = vrot.slane %v592, 1
        %v626 = vrot.slane %v594, 1
        %v627 = vrot.slane %v596, 1
        %v628 = vrot.slane %v598, 1
        %v629 = vrot.slane %v600, 1
        %v630 = vrot.slane %v602, 1
        %v640 = vmax.f32 %v604, %v622
        %v641 = vmax.f32 %v605, %v623
        %v642 = vmax.f32 %v606, %v624
        %v643 = vmax.f32 %v607, %v625
        %v644 = vmax.f32 %v608, %v626
        %v645 = vmax.f32 %v609, %v627
        %v646 = vmax.f32 %v610, %v628
        %v647 = vmax.f32 %v611, %v629
        %v648 = vmax.f32 %v612, %v630
        %v649 = vmax.f32 %v640, %v645
        %v650 = vmax.f32 %v641, %v646
        %v651 = vmax.f32 %v642, %v647
        %v652 = vmax.f32 %v643, %v648
        %v653 = vmax.f32 %v649, %v641
        %v654 = vmax.f32 %v650, %v642
        %v655 = vmax.f32 %v651, %v643
        %v656 = vmax.f32 %v652, %v644
        %v657 = vpack.c.bf16 %v653, %v653
        %v658 = vpack.c.bf16 %v654, %v654
        %v659 = vpack.c.bf16 %v655, %v655
        %v660 = vpack.c.bf16 %v656, %v656
        %661 = vst [vmem:[%s225] sm:$0x3] %v657
        %662 = vst [vmem:[%s225 + $0x2] sm:$0x3] %v658
        %663 = vst [vmem:[%s225 + $0x4] sm:$0x3] %v659
        %664 = vst [vmem:[%s225 + $0x6] sm:$0x3] %v660
        %s665 = sand.u32 %s113, 1
        %s666 = scalar_lea.sflag [#allocation4], %s665
        %s667 = sand.u32 %s113, 1
        %s668 = smul.addr %s667, 8
        %s669 = scalar_lea.vmem [#allocation7], %s668
        // Predicated region
        $region41: #{tpu_custom_call.1} parent=31 // pred_check
          %p670 = pneg %p123
        $region42: #{tpu_custom_call.1} parent=31 // pred_check_branch
          %672 = sbr.rel (%p670) target = $region44
        $region43: #{tpu_custom_call.1} parent=31 // pred_region
          %s673 = smul.u32 4, %s26
          %675 = vsyncadd %s666, 0
          %s676 = smul.addr %s25, 4
          %s677 = sadd.s32 %s673, %s676
          %s678 = smul.addr %s677, 2
          %s679 = scalar_lea.hbm %s3, %s678
          %s680 = sshll.u32 %s669, 4
          %s681 = int_to_ptr.vmem [resolvable:$true] %s680
          %s682 = sshll.u32 %s679, 4
          %s683 = int_to_ptr.hbm [resolvable:$true] %s682
          %688 = dma.vmem_to_hbm [thread:$0]  %s681, 128, %s683, %s666, 32, 32, 2
        $region44: #{tpu_custom_call.1} parent=31 // pred_fallthru
          _
      $region32: #{tpu_custom_call.1} parent=5 // pred_fallthru
        _
      %p689 = scmp.le.s32.totalorder 2, %s16
      // Predicated region
      $region45: #{tpu_custom_call.1} parent=5 // pred_check
        %p690 = pneg %p689
      $region46: #{tpu_custom_call.1} parent=5 // pred_check_branch
        %692 = sbr.rel (%p690) target = $region48
      $region47: #{tpu_custom_call.1} parent=5 // pred_region
        %s693 = ssub.s32 %s16, 2
        // Predicated region
        $region49: #{tpu_custom_call.1} parent=47 // pred_check
          %p694 = pneg %p129
        $region50: #{tpu_custom_call.1} parent=47 // pred_check_branch
          %696 = sbr.rel (%p694) target = $region52
        $region51: #{tpu_custom_call.1} parent=47 // pred_region
          %s697 = sand.u32 %s114, 1
          %s698 = scalar_lea.sflag [#allocation4], %s697
          %s699 = sand.u32 %s114, 1
          %s700 = smul.addr %s699, 8
          %s701 = scalar_lea.vmem [#allocation7], %s700
          %703 = dma.done %s698, 128
        $region52: #{tpu_custom_call.1} parent=47 // pred_fallthru
          _
      $region48: #{tpu_custom_call.1} parent=5 // pred_fallthru
        _
    $region6: #{tpu_custom_call.1} parent=1 // loop_footer
      %s20 = sadd.s32 1, %s16
    $region7: #{tpu_custom_call.1} parent=1 // loop_footer_branch
      %15 = sbr.rel target = $region3
    $region8: #{tpu_custom_call.1} parent=1 // loop_exit
      _
    %704 = vsyncpa [#allocation3], 1
    %s705 = scalar_lea.sflag [#allocation3], 1
    %706 = vsyncpa %s705, 1
    %707 = vsyncpa [#allocation6], 1
    %708 = vsyncpa [#allocation4], 1
    %s709 = scalar_lea.sflag [#allocation4], 1
    %710 = vsyncpa %s709, 1

</llo_original>
